<compile_context>
chip_gen: v6e
topology: v6e:2x2x1
jax: 0.10.0
libtpu: 0.0.40
codegen_flags: <defaults>
</compile_context>

<pallas_src>
import jax
import jax.numpy as jnp
from jax.experimental import pallas as pl
from jax.experimental.pallas import tpu as pltpu


def _notears_fwd_kernel(x_ref, w_ref, bd_ref, w2f_ref, b2_ref, o_ref):
    d = o_ref.shape[-1]
    dm1 = w_ref.shape[-1]
    m1 = dm1 // d

    x = x_ref[...]                                                     # [tn, d] bf16
    # fused fc1_pos - fc1_neg : one MXU matmul against the folded weight diff
    h = jnp.dot(x, w_ref[...], preferred_element_type=jnp.float32)     # [tn, m1*d] f32
    h = h + bd_ref[...]
    # LocallyConnected(d, m1, 1): per-column scale then sum over the m groups.
    t = jax.nn.sigmoid(h) * w2f_ref[...]                               # [tn, m1*d]
    acc = t[:, 0:d]
    for m in range(1, m1):                                             # m1 is small & static
        acc = acc + t[:, m * d:(m + 1) * d]
    o_ref[...] = (acc + b2_ref[...]).astype(o_ref.dtype)               # [tn, d]


def _round_up(a, b):
    return (a + b - 1) // b * b


def prepare_notears_params(params, *, matmul_dtype=jnp.bfloat16):
    """One-time prep: fold fc1_pos/fc1_neg, permute columns to m-major order,
    flatten the LocallyConnected weight, cast the matmul operand to bf16."""
    wp, bp = params["fc1_pos_w"], params["fc1_pos_b"]
    wn, bn = params["fc1_neg_w"], params["fc1_neg_b"]
    w2, b2 = params["fc2_w"], params["fc2_b"]
    dm1, d = wp.shape
    m1 = dm1 // d

    wd = (wp - wn).astype(jnp.float32)                                  # [d*m1, d]
    # column c = m*d + j of the permuted weight holds fc1 row j*m1 + m
    w_perm = wd.reshape(d, m1, d).transpose(2, 1, 0).reshape(d, m1 * d)  # [d, m1*d]
    bd_perm = (bp - bn).astype(jnp.float32).reshape(d, m1).T.reshape(1, m1 * d)
    w2f = w2[:, :, 0].astype(jnp.float32).T.reshape(1, m1 * d)          # [1, m1*d]
    b2s = b2.astype(jnp.float32).reshape(1, d)                          # [1, d]
    return {
        "w": w_perm.astype(matmul_dtype),
        "bd": bd_perm,
        "w2f": w2f,
        "b2": b2s,
    }


def notears_mlp_forward(x, prepped, *, block_n=1024):
    """x: [n, d] float32. prepped from prepare_notears_params. Returns [n, d] f32."""
    w, bd, w2f, b2 = prepped["w"], prepped["bd"], prepped["w2f"], prepped["b2"]
    n, d = x.shape
    dm1 = w.shape[1]

    x = x.astype(w.dtype)                                               # bf16 for the MXU

    # ---- batch tiling: >=2 grid steps whenever n >= 16 (v7x megacore) --------
    half = -(-n // 2)
    tn = max(8, min(_round_up(block_n, 8), _round_up(half, 8)))
    n_pad = _round_up(n, tn)
    if n_pad != n:
        x = jnp.pad(x, ((0, n_pad - n), (0, 0)))
    grid = (n_pad // tn,)

    # ---- cost / VMEM estimates (count lane padding + double buffering) -------
    lane = lambda v: _round_up(v, 128)
    sub = lambda v: _round_up(v, 8)
    itemsz = jnp.dtype(w.dtype).itemsize
    vmem_est = (
        2 * tn * lane(d) * itemsz            # x tiles (2 pipeline buffers)
        + 2 * tn * lane(d) * 4               # out tiles (2 pipeline buffers)
        + 2 * (sub(d) * lane(dm1) * itemsz   # resident fc1 weight (2 buffers)
               + 2 * sub(1) * lane(dm1) * 4  # resident bd / w2f
               + sub(1) * lane(d) * 4)       # resident b2
        + 3 * tn * lane(dm1) * 4             # h / sigmoid / t intermediates
    )
    try:
        vmem_cap = pltpu.get_tpu_info().vmem_capacity_bytes
    except Exception:
        vmem_cap = 64 << 20
    cap = int(vmem_cap * 3 // 4)             # ~48 MiB on v7x, ~96 MiB on v5e/v6e
    vmem_limit = int(min(max(int(1.25 * vmem_est) + (2 << 20), 16 << 20), cap))

    flops = 2 * n_pad * d * dm1 + 3 * n_pad * dm1
    bytes_accessed = (n_pad * d * itemsz + n_pad * d * 4
                      + d * dm1 * itemsz + 2 * dm1 * 4 + d * 4)
    cost = pl.CostEstimate(flops=flops,
                           transcendentals=n_pad * dm1,
                           bytes_accessed=bytes_accessed)

    resident = lambda shape: pl.BlockSpec(shape, lambda i: (0,) * len(shape))

    out = pl.pallas_call(
        _notears_fwd_kernel,
        out_shape=jax.ShapeDtypeStruct((n_pad, d), jnp.float32),
        grid=grid,
        in_specs=[
            pl.BlockSpec((tn, d), lambda i: (i, 0)),   # x tile (pipelined)
            resident((d, dm1)),                        # folded + permuted fc1 weight (bf16)
            resident((1, dm1)),                        # folded fc1 bias (f32)
            resident((1, dm1)),                        # flattened LC weight (f32)
            resident((1, d)),                          # LC bias (f32)
        ],
        out_specs=pl.BlockSpec((tn, d), lambda i: (i, 0)),
        compiler_params=pltpu.CompilerParams(
            dimension_semantics=("parallel",),
            vmem_limit_bytes=vmem_limit,
        ),
        cost_estimate=cost,
    )(x, w, bd, w2f, b2)

    return out[:n]


def init_notears_params(key, dims):
    """Deterministic synthetic init matching the shapes NotearsMLP.__init__ creates."""
    assert len(dims) >= 2 and dims[-1] == 1
    d, m1 = dims[0], dims[1]
    ks = jax.random.split(key, 6)
    scale1 = 1.0 / jnp.sqrt(d)
    scale2 = 1.0 / jnp.sqrt(m1)
    params = {
        # nn.Linear(d, d*m1): weight [d*m1, d], bias [d*m1]
        "fc1_pos_w": jax.random.uniform(ks[0], (d * m1, d), jnp.float32, -scale1, scale1),
        "fc1_pos_b": jax.random.uniform(ks[1], (d * m1,), jnp.float32, -scale1, scale1),
        "fc1_neg_w": jax.random.uniform(ks[2], (d * m1, d), jnp.float32, -scale1, scale1),
        "fc1_neg_b": jax.random.uniform(ks[3], (d * m1,), jnp.float32, -scale1, scale1),
        # LocallyConnected(d, m1, 1): weight [d, m1, 1], bias [d, 1]
        "fc2_w": jax.random.uniform(ks[4], (d, m1, 1), jnp.float32, -scale2, scale2),
        "fc2_b": jax.random.uniform(ks[5], (d, 1), jnp.float32, -scale2, scale2),
    }
    return params


def _reference_forward(x, p):
    """Pure-JAX f32 reference mirroring the PyTorch forward (sanity check)."""
    d = x.shape[1]
    m1 = p["fc1_pos_w"].shape[0] // d
    h = (x @ p["fc1_pos_w"].T + p["fc1_pos_b"]) - (x @ p["fc1_neg_w"].T + p["fc1_neg_b"])
    h = h.reshape(-1, d, m1)
    s = jax.nn.sigmoid(h)
    out = jnp.einsum("njm,jmo->njo", s, p["fc2_w"]) + p["fc2_b"][None]
    return out[:, :, 0]


if __name__ == "__main__":
    # dims = [d, m1, 1]  => fc2 contains exactly one LocallyConnected(d, m1, 1)
    d, m1, n = 16, 8, 8
    dims = [d, m1, 1]

    key = jax.random.PRNGKey(0)
    kx, kp = jax.random.split(key)
    x = jax.random.normal(kx, (n, d), dtype=jnp.float32)
    params = init_notears_params(kp, dims)

    prepped = prepare_notears_params(params)      # one-time weight fold/permute/cast
    out = notears_mlp_forward(x, prepped)
    out = jax.block_until_ready(out)

    ref = _reference_forward(x, params)
    assert out.shape == (n, d)
    # bf16 matmul with f32 accumulation: tolerance loosened vs the f32 reference
    max_err = float(jnp.max(jnp.abs(out - ref)))
    assert max_err < 2e-2, f"mismatch vs reference, max abs err = {max_err}"

    print("KERNEL_OK")
</pallas_src>

<mosaic_0001>
module attributes {stable_mosaic.version = 11 : i64} {
  func.func @_notears_fwd_kernel(%arg0: i32, %arg1: memref<8x16xbf16, #tpu.memory_space<vmem>>, %arg2: memref<16x128xbf16, #tpu.memory_space<vmem>>, %arg3: memref<1x128xf32, #tpu.memory_space<vmem>>, %arg4: memref<1x128xf32, #tpu.memory_space<vmem>>, %arg5: memref<1x16xf32, #tpu.memory_space<vmem>>, %arg6: memref<8x16xf32, #tpu.memory_space<vmem>>) attributes {dimension_semantics = [#tpu.dimension_semantics<parallel>], iteration_bounds = array<i64: 1>, scalar_prefetch = 0 : i64, scratch_operands = 0 : i64, tpu.core_type = #tpu.core_type<tc>, window_params = [{transform_indices = @transform_0, window_bounds = array<i64: 8, 16>}, {pipeline_mode = #tpu.pipeline_mode<synchronous>, transform_indices = @transform_1, window_bounds = array<i64: 16, 128>}, {pipeline_mode = #tpu.pipeline_mode<synchronous>, transform_indices = @transform_2, window_bounds = array<i64: 1, 128>}, {pipeline_mode = #tpu.pipeline_mode<synchronous>, transform_indices = @transform_3, window_bounds = array<i64: 1, 128>}, {pipeline_mode = #tpu.pipeline_mode<synchronous>, transform_indices = @transform_4, window_bounds = array<i64: 1, 16>}, {transform_indices = @transform_5, window_bounds = array<i64: 8, 16>}]} {
    %c0 = arith.constant 0 : index
    %c0_0 = arith.constant 0 : index
    %0 = vector.load %arg1[%c0, %c0_0] : memref<8x16xbf16, #tpu.memory_space<vmem>>, vector<8x16xbf16>
    %c0_1 = arith.constant 0 : index
    %c0_2 = arith.constant 0 : index
    %1 = vector.load %arg2[%c0_1, %c0_2] : memref<16x128xbf16, #tpu.memory_space<vmem>>, vector<16x128xbf16>
    %cst = arith.constant dense<0.000000e+00> : vector<8x128xf32>
    %2 = tpu.matmul %0, %1, %cst {dimension_numbers = #tpu.dot_dimension_numbers<[1], [0], [0], [1], [0, 0, 1, 1], [], []>} : vector<8x16xbf16>, vector<16x128xbf16>, vector<8x128xf32> -> vector<8x128xf32>
    %c0_3 = arith.constant 0 : index
    %c0_4 = arith.constant 0 : index
    %3 = vector.load %arg3[%c0_3, %c0_4] : memref<1x128xf32, #tpu.memory_space<vmem>>, vector<1x128xf32>
    %4 = vector.broadcast %3 : vector<1x128xf32> to vector<8x128xf32>
    %5 = arith.addf %2, %4 : vector<8x128xf32>
    %6 = arith.negf %5 : vector<8x128xf32>
    %7 = math.exp %6 : vector<8x128xf32>
    %cst_5 = arith.constant 1.000000e+00 : f32
    %8 = vector.broadcast %cst_5 : f32 to vector<8x128xf32>
    %9 = arith.addf %8, %7 : vector<8x128xf32>
    %10 = arith.divf %8, %9 : vector<8x128xf32>
    %c0_6 = arith.constant 0 : index
    %c0_7 = arith.constant 0 : index
    %11 = vector.load %arg4[%c0_6, %c0_7] : memref<1x128xf32, #tpu.memory_space<vmem>>, vector<1x128xf32>
    %12 = vector.broadcast %11 : vector<1x128xf32> to vector<8x128xf32>
    %13 = arith.mulf %10, %12 : vector<8x128xf32>
    %14 = vector.extract_strided_slice %13 {offsets = [0, 0], sizes = [8, 16], strides = [1, 1]} : vector<8x128xf32> to vector<8x16xf32>
    %15 = vector.extract_strided_slice %13 {offsets = [0, 16], sizes = [8, 16], strides = [1, 1]} : vector<8x128xf32> to vector<8x16xf32>
    %16 = arith.addf %14, %15 : vector<8x16xf32>
    %17 = vector.extract_strided_slice %13 {offsets = [0, 32], sizes = [8, 16], strides = [1, 1]} : vector<8x128xf32> to vector<8x16xf32>
    %18 = arith.addf %16, %17 : vector<8x16xf32>
    %19 = vector.extract_strided_slice %13 {offsets = [0, 48], sizes = [8, 16], strides = [1, 1]} : vector<8x128xf32> to vector<8x16xf32>
    %20 = arith.addf %18, %19 : vector<8x16xf32>
    %21 = vector.extract_strided_slice %13 {offsets = [0, 64], sizes = [8, 16], strides = [1, 1]} : vector<8x128xf32> to vector<8x16xf32>
    %22 = arith.addf %20, %21 : vector<8x16xf32>
    %23 = vector.extract_strided_slice %13 {offsets = [0, 80], sizes = [8, 16], strides = [1, 1]} : vector<8x128xf32> to vector<8x16xf32>
    %24 = arith.addf %22, %23 : vector<8x16xf32>
    %25 = vector.extract_strided_slice %13 {offsets = [0, 96], sizes = [8, 16], strides = [1, 1]} : vector<8x128xf32> to vector<8x16xf32>
    %26 = arith.addf %24, %25 : vector<8x16xf32>
    %27 = vector.extract_strided_slice %13 {offsets = [0, 112], sizes = [8, 16], strides = [1, 1]} : vector<8x128xf32> to vector<8x16xf32>
    %28 = arith.addf %26, %27 : vector<8x16xf32>
    %c0_8 = arith.constant 0 : index
    %c0_9 = arith.constant 0 : index
    %29 = vector.load %arg5[%c0_8, %c0_9] : memref<1x16xf32, #tpu.memory_space<vmem>>, vector<1x16xf32>
    %30 = vector.broadcast %29 : vector<1x16xf32> to vector<8x16xf32>
    %31 = arith.addf %28, %30 : vector<8x16xf32>
    %c0_10 = arith.constant 0 : index
    %c0_11 = arith.constant 0 : index
    %32 = vector.load %arg6[%c0_10, %c0_11] : memref<8x16xf32, #tpu.memory_space<vmem>>, vector<8x16xf32>
    tpu.vector_store %arg6[%c0_10, %c0_11], %31 {strides = array<i32>} : memref<8x16xf32, #tpu.memory_space<vmem>>, vector<8x16xf32>,
    return
  }
  func.func @transform_0(%arg0: i32) -> (i32, i32) {
    %c0_i32 = arith.constant 0 : i32
    %c0_i32_0 = arith.constant 0 : i32
    return %arg0, %c0_i32 : i32, i32
  }
  func.func @transform_1(%arg0: i32) -> (i32, i32) {
    %c0_i32 = arith.constant 0 : i32
    %c0_i32_0 = arith.constant 0 : i32
    %c0_i32_1 = arith.constant 0 : i32
    return %c0_i32, %c0_i32_0 : i32, i32
  }
  func.func @transform_2(%arg0: i32) -> (i32, i32) {
    %c0_i32 = arith.constant 0 : i32
    %c0_i32_0 = arith.constant 0 : i32
    %c0_i32_1 = arith.constant 0 : i32
    return %c0_i32, %c0_i32_0 : i32, i32
  }
  func.func @transform_3(%arg0: i32) -> (i32, i32) {
    %c0_i32 = arith.constant 0 : i32
    %c0_i32_0 = arith.constant 0 : i32
    %c0_i32_1 = arith.constant 0 : i32
    return %c0_i32, %c0_i32_0 : i32, i32
  }
  func.func @transform_4(%arg0: i32) -> (i32, i32) {
    %c0_i32 = arith.constant 0 : i32
    %c0_i32_0 = arith.constant 0 : i32
    %c0_i32_1 = arith.constant 0 : i32
    return %c0_i32, %c0_i32_0 : i32, i32
  }
  func.func @transform_5(%arg0: i32) -> (i32, i32) {
    %c0_i32 = arith.constant 0 : i32
    %c0_i32_0 = arith.constant 0 : i32
    return %arg0, %c0_i32 : i32, i32
  }
}

</mosaic_0001>

<llo_original>
// kernel: tpu_custom_call.1
$region0: #{tpu_custom_call.1}
  #allocation0 [shape = 'u32[]', space=smem, size = 0x4, offset = 0x4, fixed_abs, tag = 'smem constant byte address 0x4 - core index']
  #allocation1 [shape = 'u32[144,128]{1,0:T(1,128)}', space=vmem, size = 0x12000, scoped, tag = 'internal scratch']
  %s0 = inlined_call_operand.hbm [shape: bf16[8,16], index: 0, kind: input, shape index: {}]
  %s1 = inlined_call_operand.hbm [shape: bf16[16,128], index: 1, kind: input, shape index: {}]
  %s2 = inlined_call_operand.vmem [shape: f32[1,128], index: 2, kind: input, shape index: {}]
  %s3 = inlined_call_operand.vmem [shape: f32[1,128], index: 3, kind: input, shape index: {}]
  %s4 = inlined_call_operand.vmem [shape: f32[1,16], index: 4, kind: input, shape index: {}]
  %s5 = inlined_call_operand.hbm [shape: f32[8,16], index: 5, kind: output, shape index: {}]
  %s6 = sld [smem:[#allocation0]]
  $region38: #{tpu_custom_call.1} parent=0
    _
  %s8 = ssub.s32 1, %s6
  %s9 = scalar_select 0, %s8, %s6
  $region1: #{tpu_custom_call.1} parent=0
    #allocation2 [shape = 'u8[2048]{0}', space=vmem, size = 0x800, scoped, tag = 'input window, operand 0, single buffered']
    #allocation3 [shape = 's32[1]{0}', space=sflag, size = 0x4, scoped, tag = 'scoped memory for tpu_custom_call.1']
    #allocation4 [shape = 's32[1]{0}', space=sflag, size = 0x4, scoped, tag = 'scoped memory for tpu_custom_call.1']
    #allocation5 [shape = 'u8[4096]{0}', space=vmem, size = 0x1000, scoped, tag = 'input window, operand 1, single buffered']
    #allocation6 [shape = 's32[1]{0}', space=sflag, size = 0x4, scoped, tag = 'scoped memory for tpu_custom_call.1']
    #allocation7 [shape = 'u8[4096]{0}', space=vmem, size = 0x1000, scoped, tag = 'output window, operand 0, single buffered']
    %10 = vsyncpa [#allocation3], 0
    %11 = vsyncpa [#allocation6], 0
    %12 = vsyncpa [#allocation4], 0
    // Predicated region
    $region2: #{tpu_custom_call.1} parent=1 // pred_check
      _
    $region3: #{tpu_custom_call.1} parent=1 // pred_check_branch
      %14 = sbr.rel (0) target = $region5
    $region4: #{tpu_custom_call.1} parent=1 // pred_region
      %s16 = ssub.s32 64, 64
      %17 = vsyncadd [#allocation3], %s16
      %s19 = sshll.u32 [#allocation2], 4
      %s20 = int_to_ptr.vmem [resolvable:$true] %s19
      %22 = dma.hbm_to_vmem [thread:$0]  %s0, 64, %s20, [#allocation3]
    $region5: #{tpu_custom_call.1} parent=1 // pred_fallthru
      _
    // Predicated region
    $region6: #{tpu_custom_call.1} parent=1 // pred_check
      _
    $region7: #{tpu_custom_call.1} parent=1 // pred_check_branch
      %24 = sbr.rel (0) target = $region9
    $region8: #{tpu_custom_call.1} parent=1 // pred_region
      %s26 = ssub.s32 128, 128
      %27 = vsyncadd [#allocation6], %s26
      %s28 = sshll.u32 [#allocation5], 4
      %s29 = int_to_ptr.vmem [resolvable:$true] %s28
      %34 = dma.hbm_to_vmem [thread:$0]  %s1, 128, %s29, [#allocation6], 64, 64, 4
    $region9: #{tpu_custom_call.1} parent=1 // pred_fallthru
      _
    // Predicated region
    $region10: #{tpu_custom_call.1} parent=1 // pred_check
      _
    $region11: #{tpu_custom_call.1} parent=1 // pred_check_branch
      %36 = sbr.rel (0) target = $region13
    $region12: #{tpu_custom_call.1} parent=1 // pred_region
      _
    $region13: #{tpu_custom_call.1} parent=1 // pred_fallthru
      _
    // Predicated region
    $region14: #{tpu_custom_call.1} parent=1 // pred_check
      _
    $region15: #{tpu_custom_call.1} parent=1 // pred_check_branch
      %38 = sbr.rel (0) target = $region17
    $region16: #{tpu_custom_call.1} parent=1 // pred_region
      _
    $region17: #{tpu_custom_call.1} parent=1 // pred_fallthru
      _
    // Predicated region
    $region18: #{tpu_custom_call.1} parent=1 // pred_check
      _
    $region19: #{tpu_custom_call.1} parent=1 // pred_check_branch
      %40 = sbr.rel (0) target = $region21
    $region20: #{tpu_custom_call.1} parent=1 // pred_region
      _
    $region21: #{tpu_custom_call.1} parent=1 // pred_fallthru
      _
    // Predicated region
    $region22: #{tpu_custom_call.1} parent=1 // pred_check
      _
    $region23: #{tpu_custom_call.1} parent=1 // pred_check_branch
      %42 = sbr.rel (0) target = $region25
    $region24: #{tpu_custom_call.1} parent=1 // pred_region
      %43 = dma.done [#allocation3], 64
    $region25: #{tpu_custom_call.1} parent=1 // pred_fallthru
      _
    // Predicated region
    $region26: #{tpu_custom_call.1} parent=1 // pred_check
      _
    $region27: #{tpu_custom_call.1} parent=1 // pred_check_branch
      %45 = sbr.rel (0) target = $region29
    $region28: #{tpu_custom_call.1} parent=1 // pred_region
      %46 = dma.done [#allocation6], 128
    $region29: #{tpu_custom_call.1} parent=1 // pred_fallthru
      _
    %v48 = vld [vmem:[#allocation2] sm:$0xf]
    %v49 = vld [vmem:[#allocation5] sm:$0xf]
    %v50 = vld [vmem:[#allocation5 + $0x4] sm:$0xf]
    %v51 = vld [vmem:[%s2] sm:$0x1]
    %v53 = vlaneseq
    %v54 = vshrl.u32 %v53, 7
    %v55 = vsub.s32 0, %v54
    %v56 = vrot.slane %v51, %v55
    %v60 = vunpack.c.l.b16 %v49
    %v61 = vunpack.c.l.b16 %v50
    %v62 = vpack.c.b16 %v61, %v60
    %vm64 = vcmask 130048
    %v66 = vsel %vm64, %v48, 0
    %68 = vmatprep.subr.bf16.mxu0 0
    %69 = vmatpush1.bf16.msra.mxu0 0
    %70 = vmatprep.subr.bf16.mxu0 0
    %71 = vmatpush1.bf16.msra.mxu0 0
    %72 = vmatprep.subr.bf16.mxu0 0
    %73 = vmatpush1.bf16.msra.mxu0 0
    %74 = vmatprep.subr.bf16.mxu0 0
    %75 = vmatpush1.bf16.msra.mxu0 0
    %76 = vmatprep.subr.bf16.mxu0 0
    %77 = vmatpush1.bf16.msra.mxu0 0
    %78 = vmatprep.subr.bf16.mxu0 0
    %79 = vmatpush1.bf16.msra.mxu0 0
    %80 = vmatprep.subr.bf16.mxu0 0
    %81 = vmatpush1.bf16.msra.mxu0 0
    %82 = vmatprep.subr.bf16.mxu0 0
    %83 = vmatpush1.bf16.msra.mxu0 %v62
    %84 = vmatprep.subr.bf16.mxu0 0
    %85 = vmatpush2.bf16.msra.mxu0 0
    %86 = vmatprep.subr.bf16.mxu0 0
    %87 = vmatpush2.bf16.msra.mxu0 0
    %88 = vmatprep.subr.bf16.mxu0 0
    %89 = vmatpush2.bf16.msra.mxu0 0
    %90 = vmatprep.subr.bf16.mxu0 0
    %91 = vmatpush2.bf16.msra.mxu0 0
    %92 = vmatprep.subr.bf16.mxu0 0
    %93 = vmatpush2.bf16.msra.mxu0 0
    %94 = vmatprep.subr.bf16.mxu0 0
    %95 = vmatpush2.bf16.msra.mxu0 0
    %96 = vmatprep.subr.bf16.mxu0 0
    %97 = vmatpush2.bf16.msra.mxu0 0
    %98 = vmatprep.subr.bf16.mxu0 0
    %99 = vmatpush2.bf16.msra.mxu0 0
    %100 = vmatprep.mubr.bf16.mxu0 0
    %101 = vmatmul.mubr.bf16.gmra.mxu0 %v66
    %v102 = vpop.f32.mrf.mxu0
    %v103 = vadd.f32 %v56, %v102
    %v104 = vpop.f32.mrf.mxu0
    %v105 = vpop.f32.mrf.mxu0
    %v106 = vpop.f32.mrf.mxu0
    %107 = vdwg.mxu0
    %v108 = vxor.u32 %v103, 2147483648
    %v109 = vmul.f32 %v108, 1.442695
    %v110 = vpow.pop %v109
    %v111 = vadd.f32 %v110, 1.0
    %v112 = vrcp.pop %v111
    %v113 = vmul.f32 1.0, %v112
    %v114 = vld [vmem:[%s3] sm:$0x1]
    %v116 = vlaneseq
    %v117 = vshrl.u32 %v116, 7
    %v118 = vsub.s32 0, %v117
    %v119 = vrot.slane %v114, %v118
    %v121 = vmul.f32 %v113, %v119
    %123 = vrot.lane.b32.xlu0 %v121, 112
    %v124 = vpop.permute.xlu0 %123
    %v126 = vadd.f32 %v121, %v124
    %127 = vrot.lane.b32.xlu0 %v121, 96
    %v128 = vpop.permute.xlu0 %127
    %v130 = vadd.f32 %v126, %v128
    %131 = vrot.lane.b32.xlu0 %v121, 80
    %v132 = vpop.permute.xlu0 %131
    %v134 = vadd.f32 %v130, %v132
    %135 = vrot.lane.b32.xlu0 %v121, 64
    %v136 = vpop.permute.xlu0 %135
    %v138 = vadd.f32 %v134, %v136
    %139 = vrot.lane.b32.xlu0 %v121, 48
    %v140 = vpop.permute.xlu0 %139
    %v142 = vadd.f32 %v138, %v140
    %143 = vrot.lane.b32.xlu0 %v121, 32
    %v144 = vpop.permute.xlu0 %143
    %v146 = vadd.f32 %v142, %v144
    %147 = vrot.lane.b32.xlu0 %v121, 16
    %v148 = vpop.permute.xlu0 %147
    %v150 = vadd.f32 %v146, %v148
    %v151 = vld [vmem:[%s4] sm:$0x1]
    %v153 = vlaneseq
    %v154 = vshrl.u32 %v153, 7
    %v155 = vsub.s32 0, %v154
    %v156 = vrot.slane %v151, %v155
    %v158 = vadd.f32 %v150, %v156
    %159 = vst.msk [vmem:[#allocation7] sm:$0xff] %vm64, %v158
    // Predicated region
    $region30: #{tpu_custom_call.1} parent=1 // pred_check
      _
    $region31: #{tpu_custom_call.1} parent=1 // pred_check_branch
      %161 = sbr.rel (0) target = $region33
    $region32: #{tpu_custom_call.1} parent=1 // pred_region
      %s163 = ssub.s32 128, 128
      %164 = vsyncadd [#allocation4], %s163
      %s166 = sshll.u32 [#allocation7], 4
      %s167 = int_to_ptr.vmem [resolvable:$true] %s166
      %169 = dma.vmem_to_hbm [thread:$0]  %s167, 128, %s5, [#allocation4]
    $region33: #{tpu_custom_call.1} parent=1 // pred_fallthru
      _
    // Predicated region
    $region34: #{tpu_custom_call.1} parent=1 // pred_check
      _
    $region35: #{tpu_custom_call.1} parent=1 // pred_check_branch
      %171 = sbr.rel (0) target = $region37
    $region36: #{tpu_custom_call.1} parent=1 // pred_region
      %172 = dma.done [#allocation4], 128
    $region37: #{tpu_custom_call.1} parent=1 // pred_fallthru
      _
    %173 = vsyncpa [#allocation3], 1
    %174 = vsyncpa [#allocation6], 1
    %175 = vsyncpa [#allocation4], 1

</llo_original>
